<compile_context>
chip_gen: v6e
topology: v6e:2x2x1
jax: 0.10.0
libtpu: 0.0.40
codegen_flags: <defaults>
</compile_context>

<pallas_src>
import functools

import jax
import jax.numpy as jnp
from jax.experimental import pallas as pl
from jax.experimental.pallas import tpu as pltpu


# --------------------------------------------------------------------------
# Kernels — lane-dense path (x viewed as [B, R, 128], pe resident in VMEM)
# --------------------------------------------------------------------------
def _pe_add_kernel(x_ref, pe_ref, o_ref, *, tile):
    # x_ref/o_ref: [tile, 128] (batch dim squeezed); pe_ref: [R_pad, 128] (resident)
    t = pl.program_id(1)
    pe_tile = pe_ref[pl.ds(t * tile, tile), :]
    o_ref[...] = x_ref[...] + pe_tile


def _pe_add_dropout_kernel(x_ref, pe_ref, m_ref, o_ref, *, tile):
    # m_ref holds the pre-scaled keep mask: 0 or 1/(1-p), same dtype as x.
    t = pl.program_id(1)
    pe_tile = pe_ref[pl.ds(t * tile, tile), :]
    o_ref[...] = (x_ref[...] + pe_tile) * m_ref[...]


# --------------------------------------------------------------------------
# Kernels — fallback path (S*D not a multiple of 128): one [S, D] slab / batch
# --------------------------------------------------------------------------
def _pe_add_kernel_2d(x_ref, pe_ref, o_ref):
    o_ref[...] = x_ref[...] + pe_ref[...]


def _pe_add_dropout_kernel_2d(x_ref, pe_ref, m_ref, o_ref):
    o_ref[...] = (x_ref[...] + pe_ref[...]) * m_ref[...]


# --------------------------------------------------------------------------
# Sinusoidal table (same math as the PyTorch __init__), shape [max_len, d_model]
# --------------------------------------------------------------------------
def make_positional_encoding(d_model, max_len=100):
    position = jnp.arange(max_len, dtype=jnp.float32)[:, None]              # [max_len, 1]
    div_term = jnp.exp(
        jnp.arange(0, d_model, 2, dtype=jnp.float32) * -(jnp.log(10000.0) / d_model)
    )                                                                        # [ceil(d/2)]
    angles = position * div_term                                             # [max_len, ceil(d/2)]
    pe = jnp.zeros((max_len, d_model), jnp.float32)
    pe = pe.at[:, 0::2].set(jnp.sin(angles))
    pe = pe.at[:, 1::2].set(jnp.cos(angles[:, : d_model // 2]))
    return pe


# --------------------------------------------------------------------------
# Forward wrapper
# --------------------------------------------------------------------------
def positional_encoding_forward(x, pe, *, p=0.1, training=False, rng=None):
    """x: [B, S, D]; pe: [max_len, D]. Returns dropout(x + pe[:S])."""
    B, S, D = x.shape
    pe_s = pe[:S, :].astype(x.dtype)                      # glue slice outside the kernel

    apply_dropout = bool(training) and float(p) > 0.0
    if apply_dropout and float(p) >= 1.0:
        return jnp.zeros_like(x)                          # degenerate p=1 edge case

    mask = None
    if apply_dropout:
        keep_prob = 1.0 - float(p)
        if rng is None:
            rng = jax.random.PRNGKey(0)
        # Pre-scaled keep mask: 0 (dropped) or 1/keep_prob (kept).
        mask = (
            jax.random.bernoulli(rng, keep_prob, (B, S, D)).astype(x.dtype)
            / jnp.asarray(keep_prob, x.dtype)
        )

    total = S * D
    if total % 128 == 0:
        # ---------------- Lane-dense path ----------------
        R = total // 128
        TILE = R if R <= 512 else 512
        nt = pl.cdiv(R, TILE)
        R_pad = nt * TILE

        x_f = x.reshape(B, R, 128)                        # free row-major view
        pe_f = pe_s.reshape(R, 128)
        if R_pad != R:                                    # pad the tiny pe table only
            pe_f = jnp.pad(pe_f, ((0, R_pad - R), (0, 0)))

        x_spec = pl.BlockSpec((None, TILE, 128), lambda b, t: (b, t, 0))
        pe_spec = pl.BlockSpec((R_pad, 128), lambda b, t: (0, 0))   # constant -> VMEM-resident
        out_spec = pl.BlockSpec((None, TILE, 128), lambda b, t: (b, t, 0))
        cp = pltpu.CompilerParams(dimension_semantics=("parallel", "parallel"))

        if apply_dropout:
            m_f = mask.reshape(B, R, 128)
            out_f = pl.pallas_call(
                functools.partial(_pe_add_dropout_kernel, tile=TILE),
                out_shape=jax.ShapeDtypeStruct((B, R, 128), x.dtype),
                grid=(B, nt),
                in_specs=[x_spec, pe_spec, x_spec],
                out_specs=out_spec,
                compiler_params=cp,
            )(x_f, pe_f, m_f)
        else:
            out_f = pl.pallas_call(
                functools.partial(_pe_add_kernel, tile=TILE),
                out_shape=jax.ShapeDtypeStruct((B, R, 128), x.dtype),
                grid=(B, nt),
                in_specs=[x_spec, pe_spec],
                out_specs=out_spec,
                compiler_params=cp,
            )(x_f, pe_f)
        return out_f.reshape(B, S, D)

    # ---------------- Fallback path (D not lane-dense) ----------------
    x_spec = pl.BlockSpec((None, S, D), lambda b: (b, 0, 0))
    pe_spec = pl.BlockSpec((S, D), lambda b: (0, 0))
    out_spec = pl.BlockSpec((None, S, D), lambda b: (b, 0, 0))
    cp = pltpu.CompilerParams(dimension_semantics=("parallel",))

    if apply_dropout:
        return pl.pallas_call(
            _pe_add_dropout_kernel_2d,
            out_shape=jax.ShapeDtypeStruct((B, S, D), x.dtype),
            grid=(B,),
            in_specs=[x_spec, pe_spec, x_spec],
            out_specs=out_spec,
            compiler_params=cp,
        )(x, pe_s, mask)

    return pl.pallas_call(
        _pe_add_kernel_2d,
        out_shape=jax.ShapeDtypeStruct((B, S, D), x.dtype),
        grid=(B,),
        in_specs=[x_spec, pe_spec],
        out_specs=out_spec,
        compiler_params=cp,
    )(x, pe_s)


if __name__ == "__main__":
    key = jax.random.PRNGKey(0)
    k_x, k_drop, k_x2 = jax.random.split(key, 3)

    # Shapes consistent with the module: [batch, seq_length, d_model]
    B, S, D = 2, 8, 32
    x = jax.random.normal(k_x, (B, S, D), dtype=jnp.float32)
    pe = make_positional_encoding(D, max_len=100)

    # --- Eval mode (dropout is identity): lane-dense path, check vs pure JAX.
    out_eval = positional_encoding_forward(x, pe, p=0.1, training=False)
    jax.block_until_ready(out_eval)
    ref = x + pe[:S, :][None, :, :]
    assert out_eval.shape == (B, S, D)
    assert jnp.allclose(out_eval, ref, atol=1e-6), "eval-mode mismatch vs reference"

    # --- Training mode: each output element is either 0 or (x+pe)/(1-p).
    p = 0.1
    out_train = positional_encoding_forward(x, pe, p=p, training=True, rng=k_drop)
    jax.block_until_ready(out_train)
    scaled = ref / (1.0 - p)
    ok = jnp.isclose(out_train, 0.0, atol=1e-6) | jnp.isclose(
        out_train, scaled, rtol=1e-5, atol=1e-5
    )
    assert out_train.shape == (B, S, D)
    assert bool(jnp.all(ok)), "training-mode output is not a valid dropout of (x + pe)"

    # --- Fallback path (S*D not a multiple of 128), eval mode.
    D2 = 20
    x2 = jax.random.normal(k_x2, (B, S, D2), dtype=jnp.float32)
    pe2 = make_positional_encoding(D2, max_len=100)
    out2 = positional_encoding_forward(x2, pe2, p=0.1, training=False)
    jax.block_until_ready(out2)
    ref2 = x2 + pe2[:S, :][None, :, :]
    assert jnp.allclose(out2, ref2, atol=1e-6), "fallback-path mismatch vs reference"

    print("KERNEL_OK")
</pallas_src>

<mosaic_0001>
module attributes {stable_mosaic.version = 11 : i64} {
  func.func @_pe_add_kernel(%arg0: i32, %arg1: i32, %arg2: memref<1x2x128xf32, #tpu.memory_space<vmem>>, %arg3: memref<2x128xf32, #tpu.memory_space<vmem>>, %arg4: memref<1x2x128xf32, #tpu.memory_space<vmem>>) attributes {dimension_semantics = [#tpu.dimension_semantics<parallel>, #tpu.dimension_semantics<parallel>], iteration_bounds = array<i64: 2, 1>, scalar_prefetch = 0 : i64, scratch_operands = 0 : i64, tpu.core_type = #tpu.core_type<tc>, window_params = [{transform_indices = @transform_0, window_bounds = array<i64: 1, 2, 128>}, {pipeline_mode = #tpu.pipeline_mode<synchronous>, transform_indices = @transform_1, window_bounds = array<i64: 2, 128>}, {transform_indices = @transform_2, window_bounds = array<i64: 1, 2, 128>}]} {
    %c2_i32 = arith.constant 2 : i32
    %0 = arith.muli %arg1, %c2_i32 : i32
    %1 = arith.index_cast %0 : i32 to index
    %c0 = arith.constant 0 : index
    %2 = vector.load %arg3[%1, %c0] : memref<2x128xf32, #tpu.memory_space<vmem>>, vector<2x128xf32>
    %c0_0 = arith.constant 0 : index
    %c0_1 = arith.constant 0 : index
    %c0_2 = arith.constant 0 : index
    %3 = vector.load %arg2[%c0_0, %c0_1, %c0_2] : memref<1x2x128xf32, #tpu.memory_space<vmem>>, vector<1x2x128xf32>
    %4 = vector.shape_cast %3 : vector<1x2x128xf32> to vector<2x128xf32>
    %5 = arith.addf %4, %2 : vector<2x128xf32>
    %c0_3 = arith.constant 0 : index
    %c0_4 = arith.constant 0 : index
    %c0_5 = arith.constant 0 : index
    %6 = vector.load %arg4[%c0_3, %c0_4, %c0_5] : memref<1x2x128xf32, #tpu.memory_space<vmem>>, vector<1x2x128xf32>
    %7 = vector.shape_cast %6 : vector<1x2x128xf32> to vector<2x128xf32>
    %8 = vector.shape_cast %5 : vector<2x128xf32> to vector<1x2x128xf32>
    tpu.vector_store %arg4[%c0_3, %c0_4, %c0_5], %8 {strides = array<i32>} : memref<1x2x128xf32, #tpu.memory_space<vmem>>, vector<1x2x128xf32>,
    return
  }
  func.func @transform_0(%arg0: i32, %arg1: i32) -> (i32, i32, i32) {
    %c0_i32 = arith.constant 0 : i32
    %c0_i32_0 = arith.constant 0 : i32
    return %arg0, %arg1, %c0_i32 : i32, i32, i32
  }
  func.func @transform_1(%arg0: i32, %arg1: i32) -> (i32, i32) {
    %c0_i32 = arith.constant 0 : i32
    %c0_i32_0 = arith.constant 0 : i32
    %c0_i32_1 = arith.constant 0 : i32
    return %c0_i32, %c0_i32_0 : i32, i32
  }
  func.func @transform_2(%arg0: i32, %arg1: i32) -> (i32, i32, i32) {
    %c0_i32 = arith.constant 0 : i32
    %c0_i32_0 = arith.constant 0 : i32
    return %arg0, %arg1, %c0_i32 : i32, i32, i32
  }
}

</mosaic_0001>

<llo_original>
// kernel: tpu_custom_call.1
$region0: #{tpu_custom_call.1}
  #allocation0 [shape = 'u32[]', space=smem, size = 0x4, offset = 0x4, fixed_abs, tag = 'smem constant byte address 0x4 - core index']
  #allocation1 [shape = 'u32[144,128]{1,0:T(1,128)}', space=vmem, size = 0x12000, scoped, tag = 'internal scratch']
  %s0 = inlined_call_operand.hbm [shape: f32[2,2,128], index: 0, kind: input, shape index: {}]
  %s1 = inlined_call_operand.hbm [shape: f32[2,128], index: 1, kind: input, shape index: {}]
  %s2 = inlined_call_operand.hbm [shape: f32[2,2,128], index: 2, kind: output, shape index: {}]
  %s3 = sld [smem:[#allocation0]]
  $region49: #{tpu_custom_call.1} parent=0
    _
  %s5 = ssub.s32 1, %s3
  %s6 = scalar_select 0, %s5, %s3
  $region1: #{tpu_custom_call.1} parent=0
    #allocation2 [shape = 'u8[2048]{0}', space=vmem, size = 0x800, scoped, tag = 'input window, operand 0']
    #allocation3 [shape = 's32[2]{0}', space=sflag, size = 0x8, scoped, tag = 'scoped memory for tpu_custom_call.1']
    #allocation4 [shape = 's32[2]{0}', space=sflag, size = 0x8, scoped, tag = 'scoped memory for tpu_custom_call.1']
    #allocation5 [shape = 'u8[1024]{0}', space=vmem, size = 0x400, scoped, tag = 'input window, operand 1, single buffered']
    #allocation6 [shape = 's32[1]{0}', space=sflag, size = 0x4, scoped, tag = 'scoped memory for tpu_custom_call.1']
    #allocation7 [shape = 'u8[2048]{0}', space=vmem, size = 0x800, scoped, tag = 'output window, operand 0']
    %7 = vsyncpa [#allocation3], 0
    %s8 = scalar_lea.sflag [#allocation3], 1
    %9 = vsyncpa %s8, 0
    %10 = vsyncpa [#allocation6], 0
    %11 = vsyncpa [#allocation4], 0
    %s12 = scalar_lea.sflag [#allocation4], 1
    %13 = vsyncpa %s12, 0
    loop: start=0, step=1, limit=4
    $region2: #{tpu_custom_call.1} parent=1 // loop_pre_header
      _
    $region3: #{tpu_custom_call.1} parent=1 // loop_header
      %s15 = sphi 0, %s19
      %p16 = scmp.ge.s32.totalorder %s15, 4
      %s22 = sphi 0, %s34
      %s23 = sphi 0, %s30
      %s24 = sphi 0, %s22
      %s25 = sphi 0, %s23
      %s26 = sphi 0, %s24
      %s27 = sphi 0, %s25
      %s39 = sphi 0, %s41
      %s42 = sphi 0, %s39
      %s43 = sphi 0, %s42
      %s59 = sphi 0, %s43
      %s63 = sphi 0, %s63
      %s65 = sphi 0, %s63
      %s66 = sphi 0, %s65
      %s80 = sphi 0, %s66
      %s88 = sphi 0, %s90
      %s91 = sphi 0, %s88
      %s92 = sphi 0, %s91
      %s108 = sphi 0, %s92
    $region4: #{tpu_custom_call.1} parent=1 // loop_header_branch
      %18 = sbr.rel (%p16) target = $region8
    $region5: #{tpu_custom_call.1} parent=1 // loop_body
      %s20 = ssub.s32 %s15, 1
      %s21 = ssub.s32 %s15, 2
      %s28 = sadd.s32 1, %s23
      %p29 = scmp.ge.s32.totalorder %s28, 1
      %s30 = scalar_select %p29, 0, %s28
      %s31 = sadd.s32 1, %s22
      %s32 = scalar_select %p29, %s31, %s22
      %p33 = scmp.ge.s32.totalorder %s32, 2
      %s34 = scalar_select %p33, 0, %s32
      %s35 = ssub.s32 %s22, %s34
      %s36 = ssub.s32 %s23, %s30
      %s37 = sor.u32 %s35, %s36
      %p38 = scmp.eq.s32.totalorder %s37, 0
      %s40 = sadd.s32 %s39, 1
      %s41 = scalar_select %p38, %s39, %s40
      %p44 = pneg %p38
      %p45 = scmp.eq.s32.totalorder %s15, 1
      %p46 = por %p44, %p45
      %p47 = scmp.ne.s32.totalorder %s39, %s42
      %p48 = scmp.eq.s32.totalorder %s15, 0
      %p49 = por %p47, %p48
      %p50 = scmp.ne.s32.totalorder %s39, %s42
      %p51 = scmp.eq.s32.totalorder %s20, 1
      %p52 = por %p50, %p51
      %p53 = scmp.ne.s32.totalorder %s42, %s43
      %p54 = scmp.eq.s32.totalorder %s20, 0
      %p55 = por %p53, %p54
      %p56 = scmp.ne.s32.totalorder %s42, %s43
      %p57 = scmp.eq.s32.totalorder %s21, 1
      %p58 = por %p56, %p57
      %p60 = scmp.ne.s32.totalorder %s43, %s59
      %p61 = scmp.eq.s32.totalorder %s21, 0
      %p62 = por %p60, %p61
      %s64 = sadd.s32 %s63, 1
      %p67 = scmp.eq.s32.totalorder %s15, 1
      %p68 = scmp.ne.s32.totalorder %s63, %s65
      %p69 = scmp.eq.s32.totalorder %s15, 0
      %p70 = por %p68, %p69
      %p71 = scmp.ne.s32.totalorder %s63, %s65
      %p72 = scmp.eq.s32.totalorder %s20, 1
      %p73 = por %p71, %p72
      %p74 = scmp.ne.s32.totalorder %s65, %s66
      %p75 = scmp.eq.s32.totalorder %s20, 0
      %p76 = por %p74, %p75
      %p77 = scmp.ne.s32.totalorder %s65, %s66
      %p78 = scmp.eq.s32.totalorder %s21, 1
      %p79 = por %p77, %p78
      %p81 = scmp.ne.s32.totalorder %s66, %s80
      %p82 = scmp.eq.s32.totalorder %s21, 0
      %p83 = por %p81, %p82
      %s84 = ssub.s32 %s22, %s34
      %s85 = ssub.s32 %s23, %s30
      %s86 = sor.u32 %s84, %s85
      %p87 = scmp.eq.s32.totalorder %s86, 0
      %s89 = sadd.s32 %s88, 1
      %s90 = scalar_select %p87, %s88, %s89
      %p93 = pneg %p87
      %p94 = scmp.eq.s32.totalorder %s15, 1
      %p95 = por %p93, %p94
      %p96 = scmp.ne.s32.totalorder %s88, %s91
      %p97 = scmp.eq.s32.totalorder %s15, 0
      %p98 = por %p96, %p97
      %p99 = scmp.ne.s32.totalorder %s88, %s91
      %p100 = scmp.eq.s32.totalorder %s20, 1
      %p101 = por %p99, %p100
      %p102 = scmp.ne.s32.totalorder %s91, %s92
      %p103 = scmp.eq.s32.totalorder %s20, 0
      %p104 = por %p102, %p103
      %p105 = scmp.ne.s32.totalorder %s91, %s92
      %p106 = scmp.eq.s32.totalorder %s21, 1
      %p107 = por %p105, %p106
      %p109 = scmp.ne.s32.totalorder %s92, %s108
      %p110 = scmp.eq.s32.totalorder %s21, 0
      %p111 = por %p109, %p110
      %p112 = scmp.le.s32.totalorder 1, %s15
      %p113 = scmp.lt.s32.totalorder %s15, 3
      %p114 = pnand %p112, %p113
      %p115 = pneg %p114
      // Predicated region
      $region9: #{tpu_custom_call.1} parent=5 // pred_check
        _
      $region10: #{tpu_custom_call.1} parent=5 // pred_check_branch
        %117 = sbr.rel (%p114) target = $region12
      $region11: #{tpu_custom_call.1} parent=5 // pred_region
        %s118 = ssub.s32 %s15, 1
        // Predicated region
        $region13: #{tpu_custom_call.1} parent=11 // pred_check
          %p119 = pneg %p76
        $region14: #{tpu_custom_call.1} parent=11 // pred_check_branch
          %121 = sbr.rel (%p119) target = $region16
        $region15: #{tpu_custom_call.1} parent=11 // pred_region
          %s123 = ssub.s32 32, 32
          %124 = vsyncadd [#allocation6], %s123
          %s126 = sshll.u32 [#allocation5], 4
          %s127 = int_to_ptr.vmem [resolvable:$true] %s126
          %129 = dma.hbm_to_vmem [thread:$0]  %s1, 32, %s127, [#allocation6]
        $region16: #{tpu_custom_call.1} parent=11 // pred_fallthru
          _
      $region12: #{tpu_custom_call.1} parent=5 // pred_fallthru
        _
      %p130 = scmp.lt.s32.totalorder %s15, 2
      // Predicated region
      $region17: #{tpu_custom_call.1} parent=5 // pred_check
        %p131 = pneg %p130
      $region18: #{tpu_custom_call.1} parent=5 // pred_check_branch
        %133 = sbr.rel (%p131) target = $region20
      $region19: #{tpu_custom_call.1} parent=5 // pred_region
        // Predicated region
        $region21: #{tpu_custom_call.1} parent=19 // pred_check
          %p134 = pneg %p49
        $region22: #{tpu_custom_call.1} parent=19 // pred_check_branch
          %136 = sbr.rel (%p134) target = $region24
        $region23: #{tpu_custom_call.1} parent=19 // pred_region
          %s137 = sand.u32 %s39, 1
          %s138 = scalar_lea.sflag [#allocation3], %s137
          %s139 = sand.u32 %s39, 1
          %s140 = smul.addr %s139, 2
          %s141 = scalar_lea.vmem [#allocation2], %s140
          %s143 = ssub.s32 32, 32
          %144 = vsyncadd %s138, %s143
          %s145 = sadd.s32 %s23, %s22
          %s146 = smul.addr %s145, 32
          %s147 = scalar_lea.hbm %s0, %s146
          %s149 = sshll.u32 %s141, 4
          %s150 = int_to_ptr.vmem [resolvable:$true] %s149
          %152 = dma.hbm_to_vmem [thread:$0]  %s147, 32, %s150, %s138
        $region24: #{tpu_custom_call.1} parent=19 // pred_fallthru
          _
      $region20: #{tpu_custom_call.1} parent=5 // pred_fallthru
        _
      %p153 = scmp.le.s32.totalorder 1, %s15
      %p154 = scmp.lt.s32.totalorder %s15, 3
      %p155 = pnand %p153, %p154
      %p156 = pneg %p155
      // Predicated region
      $region25: #{tpu_custom_call.1} parent=5 // pred_check
        _
      $region26: #{tpu_custom_call.1} parent=5 // pred_check_branch
        %158 = sbr.rel (%p155) target = $region28
      $region27: #{tpu_custom_call.1} parent=5 // pred_region
        %s159 = ssub.s32 %s15, 1
        %s160 = sand.u32 %s42, 1
        %s161 = scalar_lea.sflag [#allocation3], %s160
        %s162 = sand.u32 %s42, 1
        %s163 = smul.addr %s162, 2
        %s164 = scalar_lea.vmem [#allocation2], %s163
        // Predicated region
        $region29: #{tpu_custom_call.1} parent=27 // pred_check
          %p165 = pneg %p55
        $region30: #{tpu_custom_call.1} parent=27 // pred_check_branch
          %167 = sbr.rel (%p165) target = $region32
        $region31: #{tpu_custom_call.1} parent=27 // pred_region
          %168 = dma.done %s161, 32
        $region32: #{tpu_custom_call.1} parent=27 // pred_fallthru
          _
        // Predicated region
        $region33: #{tpu_custom_call.1} parent=27 // pred_check
          %p169 = pneg %p76
        $region34: #{tpu_custom_call.1} parent=27 // pred_check_branch
          %171 = sbr.rel (%p169) target = $region36
        $region35: #{tpu_custom_call.1} parent=27 // pred_region
          %172 = dma.done [#allocation6], 32
        $region36: #{tpu_custom_call.1} parent=27 // pred_fallthru
          _
        %s173 = sand.u32 %s42, 1
        %s174 = scalar_lea.sflag [#allocation3], %s173
        %s175 = sand.u32 %s42, 1
        %s176 = smul.addr %s175, 2
        %s177 = scalar_lea.vmem [#allocation2], %s176
        %p178 = pneg %p55
        %p179 = pneg %p52
        %p180 = pneg %p76
        %p181 = pneg %p73
        %p182 = pneg %p104
        %p183 = pneg %p101
        %s184 = sand.u32 %s91, 1
        %s185 = scalar_lea.sflag [#allocation4], %s184
        %s186 = sand.u32 %s91, 1
        %s187 = smul.addr %s186, 2
        %s188 = scalar_lea.vmem [#allocation7], %s187
        %s189 = smul.u32 %s25, 2
        %s190 = scalar_lea.vmem [#allocation5], %s189
        %v191 = vld [vmem:[%s190] sm:$0x3]
        %v192 = vld [vmem:[%s164] sm:$0x3]
        %v193 = vadd.f32 %v192, %v191
        %194 = vst [vmem:[%s188] sm:$0x3] %v193
        %s195 = sand.u32 %s91, 1
        %s196 = scalar_lea.sflag [#allocation4], %s195
        %s197 = sand.u32 %s91, 1
        %s198 = smul.addr %s197, 2
        %s199 = scalar_lea.vmem [#allocation7], %s198
        // Predicated region
        $region37: #{tpu_custom_call.1} parent=27 // pred_check
          %p200 = pneg %p101
        $region38: #{tpu_custom_call.1} parent=27 // pred_check_branch
          %202 = sbr.rel (%p200) target = $region40
        $region39: #{tpu_custom_call.1} parent=27 // pred_region
          %s204 = ssub.s32 32, 32
          %205 = vsyncadd %s196, %s204
          %s206 = sadd.s32 %s25, %s24
          %s207 = smul.addr %s206, 32
          %s208 = scalar_lea.hbm %s2, %s207
          %s210 = sshll.u32 %s199, 4
          %s211 = int_to_ptr.vmem [resolvable:$true] %s210
          %213 = dma.vmem_to_hbm [thread:$0]  %s211, 32, %s208, %s196
        $region40: #{tpu_custom_call.1} parent=27 // pred_fallthru
          _
      $region28: #{tpu_custom_call.1} parent=5 // pred_fallthru
        _
      %p214 = scmp.le.s32.totalorder 2, %s15
      // Predicated region
      $region41: #{tpu_custom_call.1} parent=5 // pred_check
        %p215 = pneg %p214
      $region42: #{tpu_custom_call.1} parent=5 // pred_check_branch
        %217 = sbr.rel (%p215) target = $region44
      $region43: #{tpu_custom_call.1} parent=5 // pred_region
        %s218 = ssub.s32 %s15, 2
        // Predicated region
        $region45: #{tpu_custom_call.1} parent=43 // pred_check
          %p219 = pneg %p107
        $region46: #{tpu_custom_call.1} parent=43 // pred_check_branch
          %221 = sbr.rel (%p219) target = $region48
        $region47: #{tpu_custom_call.1} parent=43 // pred_region
          %s222 = sand.u32 %s92, 1
          %s223 = scalar_lea.sflag [#allocation4], %s222
          %s224 = sand.u32 %s92, 1
          %s225 = smul.addr %s224, 2
          %s226 = scalar_lea.vmem [#allocation7], %s225
          %227 = dma.done %s223, 32
        $region48: #{tpu_custom_call.1} parent=43 // pred_fallthru
          _
      $region44: #{tpu_custom_call.1} parent=5 // pred_fallthru
        _
    $region6: #{tpu_custom_call.1} parent=1 // loop_footer
      %s19 = sadd.s32 1, %s15
    $region7: #{tpu_custom_call.1} parent=1 // loop_footer_branch
      %14 = sbr.rel target = $region3
    $region8: #{tpu_custom_call.1} parent=1 // loop_exit
      _
    %228 = vsyncpa [#allocation3], 1
    %s229 = scalar_lea.sflag [#allocation3], 1
    %230 = vsyncpa %s229, 1
    %231 = vsyncpa [#allocation6], 1
    %232 = vsyncpa [#allocation4], 1
    %s233 = scalar_lea.sflag [#allocation4], 1
    %234 = vsyncpa %s233, 1

</llo_original>
